<compile_context>
chip_gen: v7x
topology: tpu7x:2x2x1
jax: 0.10.0
libtpu: 0.0.40
codegen_flags: <defaults>
</compile_context>

<pallas_src>
import functools

import jax
import jax.numpy as jnp
from jax.experimental import pallas as pl
from jax.experimental.pallas import tpu as pltpu

_LANES = 512            # lane (last) dim of the 2-D slab; multiple of 128
_MAX_TILE_ROWS = 256    # 256 x 512 x 4 B = 512 KiB per block (v7x-safe)
_TWO_PI = 6.283185307179586


def _mix32(x):
    """lowbias32-style avalanche hash on uint32 lanes (constant shifts only)."""
    x = x ^ (x >> jnp.uint32(16))
    x = x * jnp.uint32(0x7FEB352D)
    x = x ^ (x >> jnp.uint32(15))
    x = x * jnp.uint32(0x846CA68B)
    x = x ^ (x >> jnp.uint32(16))
    return x


def _uniform01(h):
    """uint32 hash -> float32 uniform in [0, 1) using the top 24 bits."""
    # Values < 2^24, so go via int32 and use a signed int->float convert.
    u = (h >> jnp.uint32(8)).astype(jnp.int32).astype(jnp.float32)
    return u * jnp.float32(1.0 / (1 << 24))


def _gaussian_noise_kernel(seed_ref, x_ref, o_ref, *, stddev):
    tile_rows, lanes = x_ref.shape
    half = tile_rows // 2               # tile_rows is a multiple of 16

    pid = pl.program_id(0)
    seed = seed_ref[0]

    # Globally-unique int32 counter per *pair* of output elements
    # (each Box-Muller draw feeds two outputs: cos half + sin half).
    row = jax.lax.broadcasted_iota(jnp.int32, (half, lanes), 0)
    col = jax.lax.broadcasted_iota(jnp.int32, (half, lanes), 1)
    ctr = ((pid * (half * lanes) + row * lanes + col) ^ seed).astype(jnp.uint32)

    # Two independent hash streams -> two uniform fields.
    u1 = 1.0 - _uniform01(_mix32(ctr + jnp.uint32(0x9E3779B9)))   # (0, 1]
    u2 = _uniform01(_mix32(ctr + jnp.uint32(0x85EBCA6B)))         # [0, 1)

    # Box-Muller, using BOTH outputs (halves EUP transcendental work).
    r = jnp.sqrt(jnp.float32(-2.0) * jnp.log(u1))
    theta = jnp.float32(_TWO_PI) * u2
    z0 = r * jnp.cos(theta)
    z1 = r * jnp.sin(theta)

    std = jnp.float32(stddev)
    o_ref[:half, :] = (x_ref[:half, :].astype(jnp.float32)
                       + std * z0).astype(o_ref.dtype)
    o_ref[half:, :] = (x_ref[half:, :].astype(jnp.float32)
                       + std * z1).astype(o_ref.dtype)


def gaussian_noise(x, *, stddev, seed=0, training=True):
    """Forward pass of GaussianNoise: x + stddev * N(0,1) noise when training."""
    if not training:
        return x

    orig_shape = x.shape
    total = x.size

    # Lane-dense 2-D slab (rows, _LANES); pad the flat tail with zeros.
    rows = -(-total // _LANES)
    if rows >= _MAX_TILE_ROWS:
        tile_rows = _MAX_TILE_ROWS
    else:
        tile_rows = ((rows + 15) // 16) * 16        # multiple of 16 (>= 16)
    padded_rows = ((rows + tile_rows - 1) // tile_rows) * tile_rows
    padded_total = padded_rows * _LANES

    flat = x.reshape(-1)
    if padded_total != total:
        flat = jnp.pad(flat, (0, padded_total - total))
    x2d = flat.reshape(padded_rows, _LANES)

    seed_arr = jnp.asarray([seed], dtype=jnp.int32)
    grid = (padded_rows // tile_rows,)

    out2d = pl.pallas_call(
        functools.partial(_gaussian_noise_kernel, stddev=float(stddev)),
        out_shape=jax.ShapeDtypeStruct(x2d.shape, x2d.dtype),
        grid=grid,
        in_specs=[
            pl.BlockSpec(memory_space=pltpu.SMEM),                  # seed scalar
            pl.BlockSpec((tile_rows, _LANES), lambda i: (i, 0)),    # x tile
        ],
        out_specs=pl.BlockSpec((tile_rows, _LANES), lambda i: (i, 0)),
        input_output_aliases={1: 0},
        compiler_params=pltpu.CompilerParams(
            dimension_semantics=("parallel",)),
    )(seed_arr, x2d)

    out = out2d.reshape(-1)
    if padded_total != total:
        out = out[:total]
    return out.reshape(orig_shape)


if __name__ == "__main__":
    key = jax.random.PRNGKey(0)
    x = jax.random.normal(key, (2, 4, 16, 16), dtype=jnp.float32)

    stddev = 0.1
    y_train = jax.block_until_ready(
        gaussian_noise(x, stddev=stddev, seed=42, training=True))
    y_eval = jax.block_until_ready(
        gaussian_noise(x, stddev=stddev, seed=42, training=False))

    assert y_train.shape == x.shape and y_train.dtype == x.dtype
    # Eval mode must be the identity.
    assert bool(jnp.all(y_eval == x))

    # Sanity-check the injected noise statistics (loose bounds at this size).
    noise = (y_train - x) / stddev
    assert abs(float(jnp.mean(noise))) < 0.2, float(jnp.mean(noise))
    assert 0.7 < float(jnp.std(noise)) < 1.3, float(jnp.std(noise))

    print("KERNEL_OK")
</pallas_src>

<mosaic_0001>
module attributes {stable_mosaic.version = 11 : i64} {
  func.func @_gaussian_noise_kernel(%arg0: i32, %arg1: memref<1xi32, #tpu.memory_space<smem>>, %arg2: memref<16x512xf32, #tpu.memory_space<vmem>>, %arg3: memref<16x512xf32, #tpu.memory_space<vmem>>) attributes {dimension_semantics = [#tpu.dimension_semantics<parallel>], iteration_bounds = array<i64: 1>, scalar_prefetch = 0 : i64, scratch_operands = 0 : i64, tpu.core_type = #tpu.core_type<tc>, window_params = [{transform_indices = @transform_0, window_bounds = array<i64: 1>}, {transform_indices = @transform_1, window_bounds = array<i64: 16, 512>}, {transform_indices = @transform_2, window_bounds = array<i64: 16, 512>}]} {
    %c0 = arith.constant 0 : index
    %0 = memref.load %arg1[%c0] : memref<1xi32, #tpu.memory_space<smem>>
    %1 = tpu.iota {dimensions = array<i32: 0>} : vector<8x512xi32>
    %2 = tpu.iota {dimensions = array<i32: 1>} : vector<8x512xi32>
    %c4096_i32 = arith.constant 4096 : i32
    %3 = arith.muli %arg0, %c4096_i32 : i32
    %c512_i32 = arith.constant 512 : i32
    %4 = vector.broadcast %c512_i32 : i32 to vector<8x512xi32>
    %5 = arith.muli %1, %4 : vector<8x512xi32>
    %6 = vector.broadcast %3 : i32 to vector<8x512xi32>
    %7 = arith.addi %6, %5 : vector<8x512xi32>
    %8 = arith.addi %7, %2 : vector<8x512xi32>
    %9 = vector.broadcast %0 : i32 to vector<8x512xi32>
    %10 = arith.xori %8, %9 : vector<8x512xi32>
    %c-1640531527_i32 = arith.constant -1640531527 : i32
    %11 = vector.broadcast %c-1640531527_i32 : i32 to vector<8x512xi32>
    %12 = arith.addi %10, %11 : vector<8x512xi32>
    %c16_i32 = arith.constant 16 : i32
    %13 = vector.broadcast %c16_i32 : i32 to vector<8x512xi32>
    %14 = arith.shrui %12, %13 : vector<8x512xi32>
    %15 = arith.xori %12, %14 : vector<8x512xi32>
    %c2146121005_i32 = arith.constant 2146121005 : i32
    %16 = vector.broadcast %c2146121005_i32 : i32 to vector<8x512xi32>
    %17 = arith.muli %15, %16 : vector<8x512xi32>
    %c15_i32 = arith.constant 15 : i32
    %18 = vector.broadcast %c15_i32 : i32 to vector<8x512xi32>
    %19 = arith.shrui %17, %18 : vector<8x512xi32>
    %20 = arith.xori %17, %19 : vector<8x512xi32>
    %c-2073254261_i32 = arith.constant -2073254261 : i32
    %21 = vector.broadcast %c-2073254261_i32 : i32 to vector<8x512xi32>
    %22 = arith.muli %20, %21 : vector<8x512xi32>
    %c16_i32_0 = arith.constant 16 : i32
    %23 = vector.broadcast %c16_i32_0 : i32 to vector<8x512xi32>
    %24 = arith.shrui %22, %23 : vector<8x512xi32>
    %25 = arith.xori %22, %24 : vector<8x512xi32>
    %c8_i32 = arith.constant 8 : i32
    %26 = vector.broadcast %c8_i32 : i32 to vector<8x512xi32>
    %27 = arith.shrui %25, %26 : vector<8x512xi32>
    %28 = arith.sitofp %27 : vector<8x512xi32> to vector<8x512xf32>
    %cst = arith.constant 5.96046448E-8 : f32
    %29 = vector.broadcast %cst : f32 to vector<8x512xf32>
    %30 = arith.mulf %28, %29 : vector<8x512xf32>
    %cst_1 = arith.constant 1.000000e+00 : f32
    %31 = vector.broadcast %cst_1 : f32 to vector<8x512xf32>
    %32 = arith.subf %31, %30 : vector<8x512xf32>
    %c-2048144789_i32 = arith.constant -2048144789 : i32
    %33 = vector.broadcast %c-2048144789_i32 : i32 to vector<8x512xi32>
    %34 = arith.addi %10, %33 : vector<8x512xi32>
    %c16_i32_2 = arith.constant 16 : i32
    %35 = vector.broadcast %c16_i32_2 : i32 to vector<8x512xi32>
    %36 = arith.shrui %34, %35 : vector<8x512xi32>
    %37 = arith.xori %34, %36 : vector<8x512xi32>
    %c2146121005_i32_3 = arith.constant 2146121005 : i32
    %38 = vector.broadcast %c2146121005_i32_3 : i32 to vector<8x512xi32>
    %39 = arith.muli %37, %38 : vector<8x512xi32>
    %c15_i32_4 = arith.constant 15 : i32
    %40 = vector.broadcast %c15_i32_4 : i32 to vector<8x512xi32>
    %41 = arith.shrui %39, %40 : vector<8x512xi32>
    %42 = arith.xori %39, %41 : vector<8x512xi32>
    %c-2073254261_i32_5 = arith.constant -2073254261 : i32
    %43 = vector.broadcast %c-2073254261_i32_5 : i32 to vector<8x512xi32>
    %44 = arith.muli %42, %43 : vector<8x512xi32>
    %c16_i32_6 = arith.constant 16 : i32
    %45 = vector.broadcast %c16_i32_6 : i32 to vector<8x512xi32>
    %46 = arith.shrui %44, %45 : vector<8x512xi32>
    %47 = arith.xori %44, %46 : vector<8x512xi32>
    %c8_i32_7 = arith.constant 8 : i32
    %48 = vector.broadcast %c8_i32_7 : i32 to vector<8x512xi32>
    %49 = arith.shrui %47, %48 : vector<8x512xi32>
    %50 = arith.sitofp %49 : vector<8x512xi32> to vector<8x512xf32>
    %cst_8 = arith.constant 5.96046448E-8 : f32
    %51 = vector.broadcast %cst_8 : f32 to vector<8x512xf32>
    %52 = arith.mulf %50, %51 : vector<8x512xf32>
    %53 = math.log %32 : vector<8x512xf32>
    %cst_9 = arith.constant -2.000000e+00 : f32
    %54 = vector.broadcast %cst_9 : f32 to vector<8x512xf32>
    %55 = arith.mulf %54, %53 : vector<8x512xf32>
    %56 = math.sqrt %55 : vector<8x512xf32>
    %cst_10 = arith.constant 6.28318548 : f32
    %57 = vector.broadcast %cst_10 : f32 to vector<8x512xf32>
    %58 = arith.mulf %57, %52 : vector<8x512xf32>
    %59 = math.cos %58 : vector<8x512xf32>
    %60 = arith.mulf %56, %59 : vector<8x512xf32>
    %61 = math.sin %58 : vector<8x512xf32>
    %62 = arith.mulf %56, %61 : vector<8x512xf32>
    %c0_11 = arith.constant 0 : index
    %c0_12 = arith.constant 0 : index
    %63 = vector.load %arg2[%c0_11, %c0_12] : memref<16x512xf32, #tpu.memory_space<vmem>>, vector<8x512xf32>
    %cst_13 = arith.constant 1.000000e-01 : f32
    %64 = vector.broadcast %cst_13 : f32 to vector<8x512xf32>
    %65 = arith.mulf %64, %60 : vector<8x512xf32>
    %66 = arith.addf %63, %65 : vector<8x512xf32>
    %c0_14 = arith.constant 0 : index
    %c0_15 = arith.constant 0 : index
    %67 = vector.load %arg3[%c0_14, %c0_15] : memref<16x512xf32, #tpu.memory_space<vmem>>, vector<8x512xf32>
    tpu.vector_store %arg3[%c0_14, %c0_15], %66 {strides = array<i32>} : memref<16x512xf32, #tpu.memory_space<vmem>>, vector<8x512xf32>,
    %c8 = arith.constant 8 : index
    %c0_16 = arith.constant 0 : index
    %68 = vector.load %arg2[%c8, %c0_16] : memref<16x512xf32, #tpu.memory_space<vmem>>, vector<8x512xf32>
    %cst_17 = arith.constant 1.000000e-01 : f32
    %69 = vector.broadcast %cst_17 : f32 to vector<8x512xf32>
    %70 = arith.mulf %69, %62 : vector<8x512xf32>
    %71 = arith.addf %68, %70 : vector<8x512xf32>
    %c8_18 = arith.constant 8 : index
    %c0_19 = arith.constant 0 : index
    %72 = vector.load %arg3[%c8_18, %c0_19] : memref<16x512xf32, #tpu.memory_space<vmem>>, vector<8x512xf32>
    tpu.vector_store %arg3[%c8_18, %c0_19], %71 {strides = array<i32>} : memref<16x512xf32, #tpu.memory_space<vmem>>, vector<8x512xf32>,
    return
  }
  func.func @transform_0(%arg0: i32) -> i32 {
    %c0_i32 = arith.constant 0 : i32
    %c0_i32_0 = arith.constant 0 : i32
    return %c0_i32 : i32
  }
  func.func @transform_1(%arg0: i32) -> (i32, i32) {
    %c0_i32 = arith.constant 0 : i32
    %c0_i32_0 = arith.constant 0 : i32
    return %arg0, %c0_i32 : i32, i32
  }
  func.func @transform_2(%arg0: i32) -> (i32, i32) {
    %c0_i32 = arith.constant 0 : i32
    %c0_i32_0 = arith.constant 0 : i32
    return %arg0, %c0_i32 : i32, i32
  }
}

</mosaic_0001>

<llo_original>
// kernel: tpu_custom_call.1
$region0: #{tpu_custom_call.1}
  #allocation0 [shape = 'u32[]', space=smem, size = 0x4, offset = 0x4, fixed_abs, tag = 'smem constant byte address 0x4 - core index']
  #allocation1 [shape = 'u32[144,128]{1,0:T(1,128)}', space=vmem, size = 0x12000, scoped, tag = 'internal scratch']
  #allocation2 [shape = 's32[1]{0:T(128)S(6)}', space=smem, size = 0x200, scoped, tag = 'scoped memory for tpu_custom_call.1']
  %s0 = inlined_call_operand.<no memory space> [shape: s32[1], index: 0, kind: input, shape index: {}]
  %s1 = inlined_call_operand.hbm [shape: f32[16,512], index: 1, kind: input, shape index: {}, may-alias: {1,2}]
  %s2 = inlined_call_operand.hbm [shape: f32[16,512], index: 2, kind: output, shape index: {}, may-alias: {1,2}]
  %s3 = sld [smem:[#allocation0]]
  $region22: #{tpu_custom_call.1} parent=0
    _
  %s5 = ssub.s32 1, %s3
  %s6 = scalar_select 0, %s5, %s3
  %7 = sst [smem:[#allocation2]] %s0
  $region1: #{tpu_custom_call.1} parent=0
    #allocation3 [shape = 'u8[32768]{0}', space=vmem, size = 0x8000, scoped, tag = 'input window, operand 1, single buffered']
    #allocation4 [shape = 's32[1]{0}', space=sflag, size = 0x4, scoped, tag = 'scoped memory for tpu_custom_call.1']
    #allocation5 [shape = 's32[1]{0}', space=sflag, size = 0x4, scoped, tag = 'scoped memory for tpu_custom_call.1']
    #allocation6 [shape = 'u8[32768]{0}', space=vmem, size = 0x8000, scoped, tag = 'output window, operand 0, single buffered']
    %8 = vsyncpa [#allocation4], 0
    %9 = vsyncpa [#allocation5], 0
    // Predicated region
    $region2: #{tpu_custom_call.1} parent=1 // pred_check
      _
    $region3: #{tpu_custom_call.1} parent=1 // pred_check_branch
      %11 = sbr.rel (0) target = $region5
    $region4: #{tpu_custom_call.1} parent=1 // pred_region
      _
    $region5: #{tpu_custom_call.1} parent=1 // pred_fallthru
      _
    // Predicated region
    $region6: #{tpu_custom_call.1} parent=1 // pred_check
      _
    $region7: #{tpu_custom_call.1} parent=1 // pred_check_branch
      %13 = sbr.rel (0) target = $region9
    $region8: #{tpu_custom_call.1} parent=1 // pred_region
      %s15 = ssub.s32 1024, 1024
      %16 = vsyncadd [#allocation4], %s15
      %s17 = sshll.u32 [#allocation3], 4
      %s18 = int_to_ptr.vmem [resolvable:$true] %s17
      %23 = dma.hbm_to_vmem [thread:$0]  %s1, 1024, %s18, [#allocation4], 512, 512, 32
    $region9: #{tpu_custom_call.1} parent=1 // pred_fallthru
      _
    // Predicated region
    $region10: #{tpu_custom_call.1} parent=1 // pred_check
      _
    $region11: #{tpu_custom_call.1} parent=1 // pred_check_branch
      %25 = sbr.rel (0) target = $region13
    $region12: #{tpu_custom_call.1} parent=1 // pred_region
      %26 = dma.done [#allocation4], 1024
    $region13: #{tpu_custom_call.1} parent=1 // pred_fallthru
      _
    %s27 = sld [smem:[#allocation2]]
    %v28 = vlaneseq
    %v29 = vshrl.u32 %v28, 7
    %v30 = vlaneseq
    %v31 = vand.u32 %v30, 127
    %v32 = vadd.s32 %v31, 128
    %v33 = vadd.s32 %v31, 256
    %v34 = vadd.s32 %v31, 384
    %s35 = smul.u32 0, 4096
    %v36 = vmul.u32 %v29, 512
    %v37 = vstv %s35
    %v38 = vadd.s32 %v37, %v36
    %v39 = vadd.s32 %v38, %v31
    %v40 = vadd.s32 %v38, %v32
    %v41 = vadd.s32 %v38, %v33
    %v42 = vadd.s32 %v38, %v34
    %v43 = vstv %s27
    %v44 = vxor.u32 %v39, %v43
    %v45 = vxor.u32 %v40, %v43
    %v46 = vxor.u32 %v41, %v43
    %v47 = vxor.u32 %v42, %v43
    %v48 = vadd.s32 %v44, 2654435769
    %v49 = vadd.s32 %v45, 2654435769
    %v50 = vadd.s32 %v46, 2654435769
    %v51 = vadd.s32 %v47, 2654435769
    %v52 = vshrl.u32 %v48, 16
    %v53 = vshrl.u32 %v49, 16
    %v54 = vshrl.u32 %v50, 16
    %v55 = vshrl.u32 %v51, 16
    %v56 = vxor.u32 %v48, %v52
    %v57 = vxor.u32 %v49, %v53
    %v58 = vxor.u32 %v50, %v54
    %v59 = vxor.u32 %v51, %v55
    %v60 = vmul.u32 %v56, 2146121005
    %v61 = vmul.u32 %v57, 2146121005
    %v62 = vmul.u32 %v58, 2146121005
    %v63 = vmul.u32 %v59, 2146121005
    %v64 = vshrl.u32 %v60, 15
    %v65 = vshrl.u32 %v61, 15
    %v66 = vshrl.u32 %v62, 15
    %v67 = vshrl.u32 %v63, 15
    %v68 = vxor.u32 %v60, %v64
    %v69 = vxor.u32 %v61, %v65
    %v70 = vxor.u32 %v62, %v66
    %v71 = vxor.u32 %v63, %v67
    %v72 = vmul.u32 %v68, 2221713035
    %v73 = vmul.u32 %v69, 2221713035
    %v74 = vmul.u32 %v70, 2221713035
    %v75 = vmul.u32 %v71, 2221713035
    %v76 = vshrl.u32 %v72, 16
    %v77 = vshrl.u32 %v73, 16
    %v78 = vshrl.u32 %v74, 16
    %v79 = vshrl.u32 %v75, 16
    %v80 = vxor.u32 %v72, %v76
    %v81 = vxor.u32 %v73, %v77
    %v82 = vxor.u32 %v74, %v78
    %v83 = vxor.u32 %v75, %v79
    %v84 = vshrl.u32 %v80, 8
    %v85 = vshrl.u32 %v81, 8
    %v86 = vshrl.u32 %v82, 8
    %v87 = vshrl.u32 %v83, 8
    %v88 = vcvt.s32.f32 %v84
    %v89 = vcvt.s32.f32 %v85
    %v90 = vcvt.s32.f32 %v86
    %v91 = vcvt.s32.f32 %v87
    %v92 = vmul.f32 %v88, 5.9604645e-08
    %v93 = vmul.f32 %v89, 5.9604645e-08
    %v94 = vmul.f32 %v90, 5.9604645e-08
    %v95 = vmul.f32 %v91, 5.9604645e-08
    %v96 = vsub.f32 1.0, %v92
    %v97 = vsub.f32 1.0, %v93
    %v98 = vsub.f32 1.0, %v94
    %v99 = vsub.f32 1.0, %v95
    %v100 = vadd.s32 %v44, 2246822507
    %v101 = vadd.s32 %v45, 2246822507
    %v102 = vadd.s32 %v46, 2246822507
    %v103 = vadd.s32 %v47, 2246822507
    %v104 = vshrl.u32 %v100, 16
    %v105 = vshrl.u32 %v101, 16
    %v106 = vshrl.u32 %v102, 16
    %v107 = vshrl.u32 %v103, 16
    %v108 = vxor.u32 %v100, %v104
    %v109 = vxor.u32 %v101, %v105
    %v110 = vxor.u32 %v102, %v106
    %v111 = vxor.u32 %v103, %v107
    %v112 = vmul.u32 %v108, 2146121005
    %v113 = vmul.u32 %v109, 2146121005
    %v114 = vmul.u32 %v110, 2146121005
    %v115 = vmul.u32 %v111, 2146121005
    %v116 = vshrl.u32 %v112, 15
    %v117 = vshrl.u32 %v113, 15
    %v118 = vshrl.u32 %v114, 15
    %v119 = vshrl.u32 %v115, 15
    %v120 = vxor.u32 %v112, %v116
    %v121 = vxor.u32 %v113, %v117
    %v122 = vxor.u32 %v114, %v118
    %v123 = vxor.u32 %v115, %v119
    %v124 = vmul.u32 %v120, 2221713035
    %v125 = vmul.u32 %v121, 2221713035
    %v126 = vmul.u32 %v122, 2221713035
    %v127 = vmul.u32 %v123, 2221713035
    %v128 = vshrl.u32 %v124, 16
    %v129 = vshrl.u32 %v125, 16
    %v130 = vshrl.u32 %v126, 16
    %v131 = vshrl.u32 %v127, 16
    %v132 = vxor.u32 %v124, %v128
    %v133 = vxor.u32 %v125, %v129
    %v134 = vxor.u32 %v126, %v130
    %v135 = vxor.u32 %v127, %v131
    %v136 = vshrl.u32 %v132, 8
    %v137 = vshrl.u32 %v133, 8
    %v138 = vshrl.u32 %v134, 8
    %v139 = vshrl.u32 %v135, 8
    %v140 = vcvt.s32.f32 %v136
    %v141 = vcvt.s32.f32 %v137
    %v142 = vcvt.s32.f32 %v138
    %v143 = vcvt.s32.f32 %v139
    %v144 = vmul.f32 %v140, 5.9604645e-08
    %v145 = vmul.f32 %v141, 5.9604645e-08
    %v146 = vmul.f32 %v142, 5.9604645e-08
    %v147 = vmul.f32 %v143, 5.9604645e-08
    %v148 = vlog2.pop %v96
    %v149 = vmul.f32 %v148, 0.6931472
    %v150 = vlog2.pop %v97
    %v151 = vmul.f32 %v150, 0.6931472
    %v152 = vlog2.pop %v98
    %v153 = vmul.f32 %v152, 0.6931472
    %v154 = vlog2.pop %v99
    %v155 = vmul.f32 %v154, 0.6931472
    %v156 = vmul.f32 %v149, -2.0
    %v157 = vmul.f32 %v151, -2.0
    %v158 = vmul.f32 %v153, -2.0
    %v159 = vmul.f32 %v155, -2.0
    %v160 = vrsqrt.pop %v156
    %v161 = vmul.f32 %v156, %v160
    %vm162 = vcmp.eq.f32.partialorder %v156, inf
    %v163 = vsel %vm162, %v156, %v161
    %vm164 = vcmp.eq.f32.partialorder %v156, 0.0
    %v165 = vand.u32 %v156, 2147483648
    %v166 = vsel %vm164, %v165, %v163
    %v167 = vrsqrt.pop %v157
    %v168 = vmul.f32 %v157, %v167
    %vm169 = vcmp.eq.f32.partialorder %v157, inf
    %v170 = vsel %vm169, %v157, %v168
    %vm171 = vcmp.eq.f32.partialorder %v157, 0.0
    %v172 = vand.u32 %v157, 2147483648
    %v173 = vsel %vm171, %v172, %v170
    %v174 = vrsqrt.pop %v158
    %v175 = vmul.f32 %v158, %v174
    %vm176 = vcmp.eq.f32.partialorder %v158, inf
    %v177 = vsel %vm176, %v158, %v175
    %vm178 = vcmp.eq.f32.partialorder %v158, 0.0
    %v179 = vand.u32 %v158, 2147483648
    %v180 = vsel %vm178, %v179, %v177
    %v181 = vrsqrt.pop %v159
    %v182 = vmul.f32 %v159, %v181
    %vm183 = vcmp.eq.f32.partialorder %v159, inf
    %v184 = vsel %vm183, %v159, %v182
    %vm185 = vcmp.eq.f32.partialorder %v159, 0.0
    %v186 = vand.u32 %v159, 2147483648
    %v187 = vsel %vm185, %v186, %v184
    %v188 = vmul.f32 %v144, 6.2831855
    %v189 = vmul.f32 %v145, 6.2831855
    %v190 = vmul.f32 %v146, 6.2831855
    %v191 = vmul.f32 %v147, 6.2831855
    %v192 = vand.u32 2147483647, %v188
    %vm193 = vcmp.le.f32.partialorder %v192, 0.7853982
    %vm194 = vcmp.lt.s32.totalorder %v188, 0
    %v195 = vand.u32 %v188, 2139095040
    %v196 = vshrl.u32 %v195, 23
    %v197 = vsub.s32 %v196, 127
    %v198 = vand.u32 2147483647, %v188
    %v199 = vand.u32 %v198, 8388607
    %v200 = vor.u32 %v199, 8388608
    %v201 = vsub.s32 0, %v200
    %v202 = vadd.s32 %v197, 1
    %vm203 = vcmp.gt.s32.totalorder %v202, 0
    %v204 = vsel %vm203, %v202, 0
    %v205 = vshrl.u32 %v204, 5
    %v206 = vand.u32 %v204, 31
    %v207 = vsub.s32 32, %v206
    %v208 = vshrl.u32 683565275, %v207
    %v209 = vshll.u32 683565275, %v206
    %v210 = vshrl.u32 2475754826, %v207
    %v211 = vor.u32 %v209, %v210
    %v212 = vshll.u32 2475754826, %v206
    %v213 = vshrl.u32 2131351028, %v207
    %v214 = vor.u32 %v212, %v213
    %v215 = vshll.u32 2131351028, %v206
    %v216 = vshrl.u32 2102212464, %v207
    %v217 = vor.u32 %v215, %v216
    %v218 = vshll.u32 2102212464, %v206
    %v219 = vshrl.u32 920167782, %v207
    %v220 = vor.u32 %v218, %v219
    %v221 = vshll.u32 920167782, %v206
    %v222 = vshrl.u32 1326507024, %v207
    %v223 = vor.u32 %v221, %v222
    %vm224 = vcmp.lt.s32.totalorder %v205, 1
    %vm225 = vcmp.lt.s32.totalorder %v205, 2
    %vm226 = vcmp.lt.s32.totalorder %v205, 3
    %vm227 = vcmp.lt.s32.totalorder %v205, 4
    %v228 = vsel %vm224, %v208, %v211
    %v229 = vsel %vm227, %v217, 2102212464
    %v230 = vsel %vm226, %v214, %v229
    %v231 = vsel %vm225, %v228, %v230
    %v232 = vsel %vm224, %v211, %v214
    %v233 = vsel %vm227, %v220, 920167782
    %v234 = vsel %vm226, %v217, %v233
    %v235 = vsel %vm225, %v232, %v234
    %v236 = vsel %vm224, %v214, %v217
    %v237 = vsel %vm227, %v223, 1326507024
    %v238 = vsel %vm226, %v220, %v237
    %v239 = vsel %vm225, %v236, %v238
    %v240 = vshll.u32 %v200, 8
    %v241 = vmul.u32.u64.compose %v240, %v239
    %v242 = vextract.low.u32 %v241
    %v243 = vextract.high.u32 %v241
    %v244 = vmul.u32.u64.compose %v240, %v235
    %v245 = vextract.low.u32 %v244
    %v246 = vextract.high.u32 %v244
    %v247 = vmul.u32 %v240, %v231
    %v248 = vadd.s32 %v243, %v245
    %vm249 = vc.u32 %v243, %v245
    %v250 = vadd.s32 %v246, 1
    %v251 = vsel %vm249, %v250, %v246
    %v252 = vadd.s32 %v247, %v251
    %v253 = vadd.s32 %v252, 536870912
    %v254 = vshrl.u32 %v253, 30
    %v255 = vshll.u32 %v254, 30
    %v256 = vsub.s32 %v252, %v255
    %vm257 = vcmp.lt.s32.totalorder %v256, 0
    %v258 = vsub.s32 0, %v256
    %v259 = vsel %vm257, %v258, %v256
    %v260 = vclz %v259
    %v261 = vsub.s32 %v260, 2
    %vm262 = vcmp.gt.s32.totalorder 0, %v261
    %v263 = vsel %vm262, 0, %v261
    %v264 = vsub.s32 32, %v263
    %v265 = vshll.u32 %v256, %v263
    %v266 = vshrl.u32 %v248, %v264
    %v267 = vor.u32 %v265, %v266
    %v268 = vsub.s32 4294967266, %v263
    %v269 = vadd.s32 %v268, 127
    %v270 = vshll.u32 %v269, 23
    %v271 = vor.u32 4788187, %v270
    %v272 = vand.u32 2147483647, %v271
    %v274 = vcvt.s32.f32 %v267
    %v275 = vmul.f32 %v274, %v272
    %v276 = vxor.u32 %v275, 2147483648
    %v277 = vsel %vm194, %v276, %v275
    %v278 = vsub.s32 4, %v254
    %v279 = vsel %vm194, %v278, %v254
    %v280 = vsel %vm193, %v188, %v277
    %v281 = vsel %vm193, 0, %v279
    %v282 = vcosq.f32.pop %v280
    %v283 = vsinq.f32.pop %v280
    %vm284 = vweird.f32 %v188
    %v285 = vand.u32 %v281, 3
    %vm286 = vcmp.lt.s32.totalorder %v285, 2
    %vm287 = vcmp.eq.s32.totalorder %v285, 0
    %v288 = vxor.u32 %v283, 2147483648
    %v289 = vsel %vm287, %v282, %v288
    %vm290 = vcmp.eq.s32.totalorder %v285, 2
    %v291 = vxor.u32 %v282, 2147483648
    %v292 = vsel %vm290, %v291, %v283
    %v293 = vsel %vm286, %v289, %v292
    %v294 = vsel %vm284, nan, %v293
    %v295 = vand.u32 2147483647, %v189
    %vm296 = vcmp.le.f32.partialorder %v295, 0.7853982
    %vm297 = vcmp.lt.s32.totalorder %v189, 0
    %v298 = vand.u32 %v189, 2139095040
    %v299 = vshrl.u32 %v298, 23
    %v300 = vsub.s32 %v299, 127
    %v301 = vand.u32 2147483647, %v189
    %v302 = vand.u32 %v301, 8388607
    %v303 = vor.u32 %v302, 8388608
    %v304 = vsub.s32 0, %v303
    %v305 = vadd.s32 %v300, 1
    %vm306 = vcmp.gt.s32.totalorder %v305, 0
    %v307 = vsel %vm306, %v305, 0
    %v308 = vshrl.u32 %v307, 5
    %v309 = vand.u32 %v307, 31
    %v310 = vsub.s32 32, %v309
    %v311 = vshrl.u32 683565275, %v310
    %v312 = vshll.u32 683565275, %v309
    %v313 = vshrl.u32 2475754826, %v310
    %v314 = vor.u32 %v312, %v313
    %v315 = vshll.u32 2475754826, %v309
    %v316 = vshrl.u32 2131351028, %v310
    %v317 = vor.u32 %v315, %v316
    %v318 = vshll.u32 2131351028, %v309
    %v319 = vshrl.u32 2102212464, %v310
    %v320 = vor.u32 %v318, %v319
    %v321 = vshll.u32 2102212464, %v309
    %v322 = vshrl.u32 920167782, %v310
    %v323 = vor.u32 %v321, %v322
    %v324 = vshll.u32 920167782, %v309
    %v325 = vshrl.u32 1326507024, %v310
    %v326 = vor.u32 %v324, %v325
    %vm327 = vcmp.lt.s32.totalorder %v308, 1
    %vm328 = vcmp.lt.s32.totalorder %v308, 2
    %vm329 = vcmp.lt.s32.totalorder %v308, 3
    %vm330 = vcmp.lt.s32.totalorder %v308, 4
    %v331 = vsel %vm327, %v311, %v314
    %v332 = vsel %vm330, %v320, 2102212464
    %v333 = vsel %vm329, %v317, %v332
    %v334 = vsel %vm328, %v331, %v333
    %v335 = vsel %vm327, %v314, %v317
    %v336 = vsel %vm330, %v323, 920167782
    %v337 = vsel %vm329, %v320, %v336
    %v338 = vsel %vm328, %v335, %v337
    %v339 = vsel %vm327, %v317, %v320
    %v340 = vsel %vm330, %v326, 1326507024
    %v341 = vsel %vm329, %v323, %v340
    %v342 = vsel %vm328, %v339, %v341
    %v343 = vshll.u32 %v303, 8
    %v344 = vmul.u32.u64.compose %v343, %v342
    %v345 = vextract.low.u32 %v344
    %v346 = vextract.high.u32 %v344
    %v347 = vmul.u32.u64.compose %v343, %v338
    %v348 = vextract.low.u32 %v347
    %v349 = vextract.high.u32 %v347
    %v350 = vmul.u32 %v343, %v334
    %v351 = vadd.s32 %v346, %v348
    %vm352 = vc.u32 %v346, %v348
    %v353 = vadd.s32 %v349, 1
    %v354 = vsel %vm352, %v353, %v349
    %v355 = vadd.s32 %v350, %v354
    %v356 = vadd.s32 %v355, 536870912
    %v357 = vshrl.u32 %v356, 30
    %v358 = vshll.u32 %v357, 30
    %v359 = vsub.s32 %v355, %v358
    %vm360 = vcmp.lt.s32.totalorder %v359, 0
    %v361 = vsub.s32 0, %v359
    %v362 = vsel %vm360, %v361, %v359
    %v363 = vclz %v362
    %v364 = vsub.s32 %v363, 2
    %vm365 = vcmp.gt.s32.totalorder 0, %v364
    %v366 = vsel %vm365, 0, %v364
    %v367 = vsub.s32 32, %v366
    %v368 = vshll.u32 %v359, %v366
    %v369 = vshrl.u32 %v351, %v367
    %v370 = vor.u32 %v368, %v369
    %v371 = vsub.s32 4294967266, %v366
    %v372 = vadd.s32 %v371, 127
    %v373 = vshll.u32 %v372, 23
    %v374 = vor.u32 4788187, %v373
    %v375 = vand.u32 2147483647, %v374
    %v377 = vcvt.s32.f32 %v370
    %v378 = vmul.f32 %v377, %v375
    %v379 = vxor.u32 %v378, 2147483648
    %v380 = vsel %vm297, %v379, %v378
    %v381 = vsub.s32 4, %v357
    %v382 = vsel %vm297, %v381, %v357
    %v383 = vsel %vm296, %v189, %v380
    %v384 = vsel %vm296, 0, %v382
    %v385 = vcosq.f32.pop %v383
    %v386 = vsinq.f32.pop %v383
    %vm387 = vweird.f32 %v189
    %v388 = vand.u32 %v384, 3
    %vm389 = vcmp.lt.s32.totalorder %v388, 2
    %vm390 = vcmp.eq.s32.totalorder %v388, 0
    %v391 = vxor.u32 %v386, 2147483648
    %v392 = vsel %vm390, %v385, %v391
    %vm393 = vcmp.eq.s32.totalorder %v388, 2
    %v394 = vxor.u32 %v385, 2147483648
    %v395 = vsel %vm393, %v394, %v386
    %v396 = vsel %vm389, %v392, %v395
    %v397 = vsel %vm387, nan, %v396
    %v398 = vand.u32 2147483647, %v190
    %vm399 = vcmp.le.f32.partialorder %v398, 0.7853982
    %vm400 = vcmp.lt.s32.totalorder %v190, 0
    %v401 = vand.u32 %v190, 2139095040
    %v402 = vshrl.u32 %v401, 23
    %v403 = vsub.s32 %v402, 127
    %v404 = vand.u32 2147483647, %v190
    %v405 = vand.u32 %v404, 8388607
    %v406 = vor.u32 %v405, 8388608
    %v407 = vsub.s32 0, %v406
    %v408 = vadd.s32 %v403, 1
    %vm409 = vcmp.gt.s32.totalorder %v408, 0
    %v410 = vsel %vm409, %v408, 0
    %v411 = vshrl.u32 %v410, 5
    %v412 = vand.u32 %v410, 31
    %v413 = vsub.s32 32, %v412
    %v414 = vshrl.u32 683565275, %v413
    %v415 = vshll.u32 683565275, %v412
    %v416 = vshrl.u32 2475754826, %v413
    %v417 = vor.u32 %v415, %v416
    %v418 = vshll.u32 2475754826, %v412
    %v419 = vshrl.u32 2131351028, %v413
    %v420 = vor.u32 %v418, %v419
    %v421 = vshll.u32 2131351028, %v412
    %v422 = vshrl.u32 2102212464, %v413
    %v423 = vor.u32 %v421, %v422
    %v424 = vshll.u32 2102212464, %v412
    %v425 = vshrl.u32 920167782, %v413
    %v426 = vor.u32 %v424, %v425
    %v427 = vshll.u32 920167782, %v412
    %v428 = vshrl.u32 1326507024, %v413
    %v429 = vor.u32 %v427, %v428
    %vm430 = vcmp.lt.s32.totalorder %v411, 1
    %vm431 = vcmp.lt.s32.totalorder %v411, 2
    %vm432 = vcmp.lt.s32.totalorder %v411, 3
    %vm433 = vcmp.lt.s32.totalorder %v411, 4
    %v434 = vsel %vm430, %v414, %v417
    %v435 = vsel %vm433, %v423, 2102212464
    %v436 = vsel %vm432, %v420, %v435
    %v437 = vsel %vm431, %v434, %v436
    %v438 = vsel %vm430, %v417, %v420
    %v439 = vsel %vm433, %v426, 920167782
    %v440 = vsel %vm432, %v423, %v439
    %v441 = vsel %vm431, %v438, %v440
    %v442 = vsel %vm430, %v420, %v423
    %v443 = vsel %vm433, %v429, 1326507024
    %v444 = vsel %vm432, %v426, %v443
    %v445 = vsel %vm431, %v442, %v444
    %v446 = vshll.u32 %v406, 8
    %v447 = vmul.u32.u64.compose %v446, %v445
    %v448 = vextract.low.u32 %v447
    %v449 = vextract.high.u32 %v447
    %v450 = vmul.u32.u64.compose %v446, %v441
    %v451 = vextract.low.u32 %v450
    %v452 = vextract.high.u32 %v450
    %v453 = vmul.u32 %v446, %v437
    %v454 = vadd.s32 %v449, %v451
    %vm455 = vc.u32 %v449, %v451
    %v456 = vadd.s32 %v452, 1
    %v457 = vsel %vm455, %v456, %v452
    %v458 = vadd.s32 %v453, %v457
    %v459 = vadd.s32 %v458, 536870912
    %v460 = vshrl.u32 %v459, 30
    %v461 = vshll.u32 %v460, 30
    %v462 = vsub.s32 %v458, %v461
    %vm463 = vcmp.lt.s32.totalorder %v462, 0
    %v464 = vsub.s32 0, %v462
    %v465 = vsel %vm463, %v464, %v462
    %v466 = vclz %v465
    %v467 = vsub.s32 %v466, 2
    %vm468 = vcmp.gt.s32.totalorder 0, %v467
    %v469 = vsel %vm468, 0, %v467
    %v470 = vsub.s32 32, %v469
    %v471 = vshll.u32 %v462, %v469
    %v472 = vshrl.u32 %v454, %v470
    %v473 = vor.u32 %v471, %v472
    %v474 = vsub.s32 4294967266, %v469
    %v475 = vadd.s32 %v474, 127
    %v476 = vshll.u32 %v475, 23
    %v477 = vor.u32 4788187, %v476
    %v478 = vand.u32 2147483647, %v477
    %v480 = vcvt.s32.f32 %v473
    %v481 = vmul.f32 %v480, %v478
    %v482 = vxor.u32 %v481, 2147483648
    %v483 = vsel %vm400, %v482, %v481
    %v484 = vsub.s32 4, %v460
    %v485 = vsel %vm400, %v484, %v460
    %v486 = vsel %vm399, %v190, %v483
    %v487 = vsel %vm399, 0, %v485
    %v488 = vcosq.f32.pop %v486
    %v489 = vsinq.f32.pop %v486
    %vm490 = vweird.f32 %v190
    %v491 = vand.u32 %v487, 3
    %vm492 = vcmp.lt.s32.totalorder %v491, 2
    %vm493 = vcmp.eq.s32.totalorder %v491, 0
    %v494 = vxor.u32 %v489, 2147483648
    %v495 = vsel %vm493, %v488, %v494
    %vm496 = vcmp.eq.s32.totalorder %v491, 2
    %v497 = vxor.u32 %v488, 2147483648
    %v498 = vsel %vm496, %v497, %v489
    %v499 = vsel %vm492, %v495, %v498
    %v500 = vsel %vm490, nan, %v499
    %v501 = vand.u32 2147483647, %v191
    %vm502 = vcmp.le.f32.partialorder %v501, 0.7853982
    %vm503 = vcmp.lt.s32.totalorder %v191, 0
    %v504 = vand.u32 %v191, 2139095040
    %v505 = vshrl.u32 %v504, 23
    %v506 = vsub.s32 %v505, 127
    %v507 = vand.u32 2147483647, %v191
    %v508 = vand.u32 %v507, 8388607
    %v509 = vor.u32 %v508, 8388608
    %v510 = vsub.s32 0, %v509
    %v511 = vadd.s32 %v506, 1
    %vm512 = vcmp.gt.s32.totalorder %v511, 0
    %v513 = vsel %vm512, %v511, 0
    %v514 = vshrl.u32 %v513, 5
    %v515 = vand.u32 %v513, 31
    %v516 = vsub.s32 32, %v515
    %v517 = vshrl.u32 683565275, %v516
    %v518 = vshll.u32 683565275, %v515
    %v519 = vshrl.u32 2475754826, %v516
    %v520 = vor.u32 %v518, %v519
    %v521 = vshll.u32 2475754826, %v515
    %v522 = vshrl.u32 2131351028, %v516
    %v523 = vor.u32 %v521, %v522
    %v524 = vshll.u32 2131351028, %v515
    %v525 = vshrl.u32 2102212464, %v516
    %v526 = vor.u32 %v524, %v525
    %v527 = vshll.u32 2102212464, %v515
    %v528 = vshrl.u32 920167782, %v516
    %v529 = vor.u32 %v527, %v528
    %v530 = vshll.u32 920167782, %v515
    %v531 = vshrl.u32 1326507024, %v516
    %v532 = vor.u32 %v530, %v531
    %vm533 = vcmp.lt.s32.totalorder %v514, 1
    %vm534 = vcmp.lt.s32.totalorder %v514, 2
    %vm535 = vcmp.lt.s32.totalorder %v514, 3
    %vm536 = vcmp.lt.s32.totalorder %v514, 4
    %v537 = vsel %vm533, %v517, %v520
    %v538 = vsel %vm536, %v526, 2102212464
    %v539 = vsel %vm535, %v523, %v538
    %v540 = vsel %vm534, %v537, %v539
    %v541 = vsel %vm533, %v520, %v523
    %v542 = vsel %vm536, %v529, 920167782
    %v543 = vsel %vm535, %v526, %v542
    %v544 = vsel %vm534, %v541, %v543
    %v545 = vsel %vm533, %v523, %v526
    %v546 = vsel %vm536, %v532, 1326507024
    %v547 = vsel %vm535, %v529, %v546
    %v548 = vsel %vm534, %v545, %v547
    %v549 = vshll.u32 %v509, 8
    %v550 = vmul.u32.u64.compose %v549, %v548
    %v551 = vextract.low.u32 %v550
    %v552 = vextract.high.u32 %v550
    %v553 = vmul.u32.u64.compose %v549, %v544
    %v554 = vextract.low.u32 %v553
    %v555 = vextract.high.u32 %v553
    %v556 = vmul.u32 %v549, %v540
    %v557 = vadd.s32 %v552, %v554
    %vm558 = vc.u32 %v552, %v554
    %v559 = vadd.s32 %v555, 1
    %v560 = vsel %vm558, %v559, %v555
    %v561 = vadd.s32 %v556, %v560
    %v562 = vadd.s32 %v561, 536870912
    %v563 = vshrl.u32 %v562, 30
    %v564 = vshll.u32 %v563, 30
    %v565 = vsub.s32 %v561, %v564
    %vm566 = vcmp.lt.s32.totalorder %v565, 0
    %v567 = vsub.s32 0, %v565
    %v568 = vsel %vm566, %v567, %v565
    %v569 = vclz %v568
    %v570 = vsub.s32 %v569, 2
    %vm571 = vcmp.gt.s32.totalorder 0, %v570
    %v572 = vsel %vm571, 0, %v570
    %v573 = vsub.s32 32, %v572
    %v574 = vshll.u32 %v565, %v572
    %v575 = vshrl.u32 %v557, %v573
    %v576 = vor.u32 %v574, %v575
    %v577 = vsub.s32 4294967266, %v572
    %v578 = vadd.s32 %v577, 127
    %v579 = vshll.u32 %v578, 23
    %v580 = vor.u32 4788187, %v579
    %v581 = vand.u32 2147483647, %v580
    %v583 = vcvt.s32.f32 %v576
    %v584 = vmul.f32 %v583, %v581
    %v585 = vxor.u32 %v584, 2147483648
    %v586 = vsel %vm503, %v585, %v584
    %v587 = vsub.s32 4, %v563
    %v588 = vsel %vm503, %v587, %v563
    %v589 = vsel %vm502, %v191, %v586
    %v590 = vsel %vm502, 0, %v588
    %v591 = vcosq.f32.pop %v589
    %v592 = vsinq.f32.pop %v589
    %vm593 = vweird.f32 %v191
    %v594 = vand.u32 %v590, 3
    %vm595 = vcmp.lt.s32.totalorder %v594, 2
    %vm596 = vcmp.eq.s32.totalorder %v594, 0
    %v597 = vxor.u32 %v592, 2147483648
    %v598 = vsel %vm596, %v591, %v597
    %vm599 = vcmp.eq.s32.totalorder %v594, 2
    %v600 = vxor.u32 %v591, 2147483648
    %v601 = vsel %vm599, %v600, %v592
    %v602 = vsel %vm595, %v598, %v601
    %v603 = vsel %vm593, nan, %v602
    %v604 = vmul.f32 %v166, %v294
    %v605 = vmul.f32 %v173, %v397
    %v606 = vmul.f32 %v180, %v500
    %v607 = vmul.f32 %v187, %v603
    %v608 = vand.u32 2147483647, %v188
    %vm609 = vcmp.le.f32.partialorder %v608, 0.7853982
    %vm610 = vcmp.lt.s32.totalorder %v188, 0
    %v611 = vand.u32 %v188, 2139095040
    %v612 = vshrl.u32 %v611, 23
    %v613 = vsub.s32 %v612, 127
    %v614 = vand.u32 2147483647, %v188
    %v615 = vand.u32 %v614, 8388607
    %v616 = vor.u32 %v615, 8388608
    %v617 = vsub.s32 0, %v616
    %v618 = vadd.s32 %v613, 1
    %vm619 = vcmp.gt.s32.totalorder %v618, 0
    %v620 = vsel %vm619, %v618, 0
    %v621 = vshrl.u32 %v620, 5
    %v622 = vand.u32 %v620, 31
    %v623 = vsub.s32 32, %v622
    %v624 = vshrl.u32 683565275, %v623
    %v625 = vshll.u32 683565275, %v622
    %v626 = vshrl.u32 2475754826, %v623
    %v627 = vor.u32 %v625, %v626
    %v628 = vshll.u32 2475754826, %v622
    %v629 = vshrl.u32 2131351028, %v623
    %v630 = vor.u32 %v628, %v629
    %v631 = vshll.u32 2131351028, %v622
    %v632 = vshrl.u32 2102212464, %v623
    %v633 = vor.u32 %v631, %v632
    %v634 = vshll.u32 2102212464, %v622
    %v635 = vshrl.u32 920167782, %v623
    %v636 = vor.u32 %v634, %v635
    %v637 = vshll.u32 920167782, %v622
    %v638 = vshrl.u32 1326507024, %v623
    %v639 = vor.u32 %v637, %v638
    %vm640 = vcmp.lt.s32.totalorder %v621, 1
    %vm641 = vcmp.lt.s32.totalorder %v621, 2
    %vm642 = vcmp.lt.s32.totalorder %v621, 3
    %vm643 = vcmp.lt.s32.totalorder %v621, 4
    %v644 = vsel %vm640, %v624, %v627
    %v645 = vsel %vm643, %v633, 2102212464
    %v646 = vsel %vm642, %v630, %v645
    %v647 = vsel %vm641, %v644, %v646
    %v648 = vsel %vm640, %v627, %v630
    %v649 = vsel %vm643, %v636, 920167782
    %v650 = vsel %vm642, %v633, %v649
    %v651 = vsel %vm641, %v648, %v650
    %v652 = vsel %vm640, %v630, %v633
    %v653 = vsel %vm643, %v639, 1326507024
    %v654 = vsel %vm642, %v636, %v653
    %v655 = vsel %vm641, %v652, %v654
    %v656 = vshll.u32 %v616, 8
    %v657 = vmul.u32.u64.compose %v656, %v655
    %v658 = vextract.low.u32 %v657
    %v659 = vextract.high.u32 %v657
    %v660 = vmul.u32.u64.compose %v656, %v651
    %v661 = vextract.low.u32 %v660
    %v662 = vextract.high.u32 %v660
    %v663 = vmul.u32 %v656, %v647
    %v664 = vadd.s32 %v659, %v661
    %vm665 = vc.u32 %v659, %v661
    %v666 = vadd.s32 %v662, 1
    %v667 = vsel %vm665, %v666, %v662
    %v668 = vadd.s32 %v663, %v667
    %v669 = vadd.s32 %v668, 536870912
    %v670 = vshrl.u32 %v669, 30
    %v671 = vshll.u32 %v670, 30
    %v672 = vsub.s32 %v668, %v671
    %vm673 = vcmp.lt.s32.totalorder %v672, 0
    %v674 = vsub.s32 0, %v672
    %v675 = vsel %vm673, %v674, %v672
    %v676 = vclz %v675
    %v677 = vsub.s32 %v676, 2
    %vm678 = vcmp.gt.s32.totalorder 0, %v677
    %v679 = vsel %vm678, 0, %v677
    %v680 = vsub.s32 32, %v679
    %v681 = vshll.u32 %v672, %v679
    %v682 = vshrl.u32 %v664, %v680
    %v683 = vor.u32 %v681, %v682
    %v684 = vsub.s32 4294967266, %v679
    %v685 = vadd.s32 %v684, 127
    %v686 = vshll.u32 %v685, 23
    %v687 = vor.u32 4788187, %v686
    %v688 = vand.u32 2147483647, %v687
    %v690 = vcvt.s32.f32 %v683
    %v691 = vmul.f32 %v690, %v688
    %v692 = vxor.u32 %v691, 2147483648
    %v693 = vsel %vm610, %v692, %v691
    %v694 = vsub.s32 4, %v670
    %v695 = vsel %vm610, %v694, %v670
    %v696 = vsel %vm609, %v188, %v693
    %v697 = vsel %vm609, 0, %v695
    %v698 = vcosq.f32.pop %v696
    %v699 = vsinq.f32.pop %v696
    %vm700 = vweird.f32 %v188
    %v701 = vadd.s32 %v697, 3
    %v702 = vand.u32 %v701, 3
    %vm703 = vcmp.lt.s32.totalorder %v702, 2
    %vm704 = vcmp.eq.s32.totalorder %v702, 0
    %v705 = vxor.u32 %v699, 2147483648
    %v706 = vsel %vm704, %v698, %v705
    %vm707 = vcmp.eq.s32.totalorder %v702, 2
    %v708 = vxor.u32 %v698, 2147483648
    %v709 = vsel %vm707, %v708, %v699
    %v710 = vsel %vm703, %v706, %v709
    %v711 = vsel %vm700, nan, %v710
    %v712 = vand.u32 2147483647, %v189
    %vm713 = vcmp.le.f32.partialorder %v712, 0.7853982
    %vm714 = vcmp.lt.s32.totalorder %v189, 0
    %v715 = vand.u32 %v189, 2139095040
    %v716 = vshrl.u32 %v715, 23
    %v717 = vsub.s32 %v716, 127
    %v718 = vand.u32 2147483647, %v189
    %v719 = vand.u32 %v718, 8388607
    %v720 = vor.u32 %v719, 8388608
    %v721 = vsub.s32 0, %v720
    %v722 = vadd.s32 %v717, 1
    %vm723 = vcmp.gt.s32.totalorder %v722, 0
    %v724 = vsel %vm723, %v722, 0
    %v725 = vshrl.u32 %v724, 5
    %v726 = vand.u32 %v724, 31
    %v727 = vsub.s32 32, %v726
    %v728 = vshrl.u32 683565275, %v727
    %v729 = vshll.u32 683565275, %v726
    %v730 = vshrl.u32 2475754826, %v727
    %v731 = vor.u32 %v729, %v730
    %v732 = vshll.u32 2475754826, %v726
    %v733 = vshrl.u32 2131351028, %v727
    %v734 = vor.u32 %v732, %v733
    %v735 = vshll.u32 2131351028, %v726
    %v736 = vshrl.u32 2102212464, %v727
    %v737 = vor.u32 %v735, %v736
    %v738 = vshll.u32 2102212464, %v726
    %v739 = vshrl.u32 920167782, %v727
    %v740 = vor.u32 %v738, %v739
    %v741 = vshll.u32 920167782, %v726
    %v742 = vshrl.u32 1326507024, %v727
    %v743 = vor.u32 %v741, %v742
    %vm744 = vcmp.lt.s32.totalorder %v725, 1
    %vm745 = vcmp.lt.s32.totalorder %v725, 2
    %vm746 = vcmp.lt.s32.totalorder %v725, 3
    %vm747 = vcmp.lt.s32.totalorder %v725, 4
    %v748 = vsel %vm744, %v728, %v731
    %v749 = vsel %vm747, %v737, 2102212464
    %v750 = vsel %vm746, %v734, %v749
    %v751 = vsel %vm745, %v748, %v750
    %v752 = vsel %vm744, %v731, %v734
    %v753 = vsel %vm747, %v740, 920167782
    %v754 = vsel %vm746, %v737, %v753
    %v755 = vsel %vm745, %v752, %v754
    %v756 = vsel %vm744, %v734, %v737
    %v757 = vsel %vm747, %v743, 1326507024
    %v758 = vsel %vm746, %v740, %v757
    %v759 = vsel %vm745, %v756, %v758
    %v760 = vshll.u32 %v720, 8
    %v761 = vmul.u32.u64.compose %v760, %v759
    %v762 = vextract.low.u32 %v761
    %v763 = vextract.high.u32 %v761
    %v764 = vmul.u32.u64.compose %v760, %v755
    %v765 = vextract.low.u32 %v764
    %v766 = vextract.high.u32 %v764
    %v767 = vmul.u32 %v760, %v751
    %v768 = vadd.s32 %v763, %v765
    %vm769 = vc.u32 %v763, %v765
    %v770 = vadd.s32 %v766, 1
    %v771 = vsel %vm769, %v770, %v766
    %v772 = vadd.s32 %v767, %v771
    %v773 = vadd.s32 %v772, 536870912
    %v774 = vshrl.u32 %v773, 30
    %v775 = vshll.u32 %v774, 30
    %v776 = vsub.s32 %v772, %v775
    %vm777 = vcmp.lt.s32.totalorder %v776, 0
    %v778 = vsub.s32 0, %v776
    %v779 = vsel %vm777, %v778, %v776
    %v780 = vclz %v779
    %v781 = vsub.s32 %v780, 2
    %vm782 = vcmp.gt.s32.totalorder 0, %v781
    %v783 = vsel %vm782, 0, %v781
    %v784 = vsub.s32 32, %v783
    %v785 = vshll.u32 %v776, %v783
    %v786 = vshrl.u32 %v768, %v784
    %v787 = vor.u32 %v785, %v786
    %v788 = vsub.s32 4294967266, %v783
    %v789 = vadd.s32 %v788, 127
    %v790 = vshll.u32 %v789, 23
    %v791 = vor.u32 4788187, %v790
    %v792 = vand.u32 2147483647, %v791
    %v794 = vcvt.s32.f32 %v787
    %v795 = vmul.f32 %v794, %v792
    %v796 = vxor.u32 %v795, 2147483648
    %v797 = vsel %vm714, %v796, %v795
    %v798 = vsub.s32 4, %v774
    %v799 = vsel %vm714, %v798, %v774
    %v800 = vsel %vm713, %v189, %v797
    %v801 = vsel %vm713, 0, %v799
    %v802 = vcosq.f32.pop %v800
    %v803 = vsinq.f32.pop %v800
    %vm804 = vweird.f32 %v189
    %v805 = vadd.s32 %v801, 3
    %v806 = vand.u32 %v805, 3
    %vm807 = vcmp.lt.s32.totalorder %v806, 2
    %vm808 = vcmp.eq.s32.totalorder %v806, 0
    %v809 = vxor.u32 %v803, 2147483648
    %v810 = vsel %vm808, %v802, %v809
    %vm811 = vcmp.eq.s32.totalorder %v806, 2
    %v812 = vxor.u32 %v802, 2147483648
    %v813 = vsel %vm811, %v812, %v803
    %v814 = vsel %vm807, %v810, %v813
    %v815 = vsel %vm804, nan, %v814
    %v816 = vand.u32 2147483647, %v190
    %vm817 = vcmp.le.f32.partialorder %v816, 0.7853982
    %vm818 = vcmp.lt.s32.totalorder %v190, 0
    %v819 = vand.u32 %v190, 2139095040
    %v820 = vshrl.u32 %v819, 23
    %v821 = vsub.s32 %v820, 127
    %v822 = vand.u32 2147483647, %v190
    %v823 = vand.u32 %v822, 8388607
    %v824 = vor.u32 %v823, 8388608
    %v825 = vsub.s32 0, %v824
    %v826 = vadd.s32 %v821, 1
    %vm827 = vcmp.gt.s32.totalorder %v826, 0
    %v828 = vsel %vm827, %v826, 0
    %v829 = vshrl.u32 %v828, 5
    %v830 = vand.u32 %v828, 31
    %v831 = vsub.s32 32, %v830
    %v832 = vshrl.u32 683565275, %v831
    %v833 = vshll.u32 683565275, %v830
    %v834 = vshrl.u32 2475754826, %v831
    %v835 = vor.u32 %v833, %v834
    %v836 = vshll.u32 2475754826, %v830
    %v837 = vshrl.u32 2131351028, %v831
    %v838 = vor.u32 %v836, %v837
    %v839 = vshll.u32 2131351028, %v830
    %v840 = vshrl.u32 2102212464, %v831
    %v841 = vor.u32 %v839, %v840
    %v842 = vshll.u32 2102212464, %v830
    %v843 = vshrl.u32 920167782, %v831
    %v844 = vor.u32 %v842, %v843
    %v845 = vshll.u32 920167782, %v830
    %v846 = vshrl.u32 1326507024, %v831
    %v847 = vor.u32 %v845, %v846
    %vm848 = vcmp.lt.s32.totalorder %v829, 1
    %vm849 = vcmp.lt.s32.totalorder %v829, 2
    %vm850 = vcmp.lt.s32.totalorder %v829, 3
    %vm851 = vcmp.lt.s32.totalorder %v829, 4
    %v852 = vsel %vm848, %v832, %v835
    %v853 = vsel %vm851, %v841, 2102212464
    %v854 = vsel %vm850, %v838, %v853
    %v855 = vsel %vm849, %v852, %v854
    %v856 = vsel %vm848, %v835, %v838
    %v857 = vsel %vm851, %v844, 920167782
    %v858 = vsel %vm850, %v841, %v857
    %v859 = vsel %vm849, %v856, %v858
    %v860 = vsel %vm848, %v838, %v841
    %v861 = vsel %vm851, %v847, 1326507024
    %v862 = vsel %vm850, %v844, %v861
    %v863 = vsel %vm849, %v860, %v862
    %v864 = vshll.u32 %v824, 8
    %v865 = vmul.u32.u64.compose %v864, %v863
    %v866 = vextract.low.u32 %v865
    %v867 = vextract.high.u32 %v865
    %v868 = vmul.u32.u64.compose %v864, %v859
    %v869 = vextract.low.u32 %v868
    %v870 = vextract.high.u32 %v868
    %v871 = vmul.u32 %v864, %v855
    %v872 = vadd.s32 %v867, %v869
    %vm873 = vc.u32 %v867, %v869
    %v874 = vadd.s32 %v870, 1
    %v875 = vsel %vm873, %v874, %v870
    %v876 = vadd.s32 %v871, %v875
    %v877 = vadd.s32 %v876, 536870912
    %v878 = vshrl.u32 %v877, 30
    %v879 = vshll.u32 %v878, 30
    %v880 = vsub.s32 %v876, %v879
    %vm881 = vcmp.lt.s32.totalorder %v880, 0
    %v882 = vsub.s32 0, %v880
    %v883 = vsel %vm881, %v882, %v880
    %v884 = vclz %v883
    %v885 = vsub.s32 %v884, 2
    %vm886 = vcmp.gt.s32.totalorder 0, %v885
    %v887 = vsel %vm886, 0, %v885
    %v888 = vsub.s32 32, %v887
    %v889 = vshll.u32 %v880, %v887
    %v890 = vshrl.u32 %v872, %v888
    %v891 = vor.u32 %v889, %v890
    %v892 = vsub.s32 4294967266, %v887
    %v893 = vadd.s32 %v892, 127
    %v894 = vshll.u32 %v893, 23
    %v895 = vor.u32 4788187, %v894
    %v896 = vand.u32 2147483647, %v895
    %v898 = vcvt.s32.f32 %v891
    %v899 = vmul.f32 %v898, %v896
    %v900 = vxor.u32 %v899, 2147483648
    %v901 = vsel %vm818, %v900, %v899
    %v902 = vsub.s32 4, %v878
    %v903 = vsel %vm818, %v902, %v878
    %v904 = vsel %vm817, %v190, %v901
    %v905 = vsel %vm817, 0, %v903
    %v906 = vcosq.f32.pop %v904
    %v907 = vsinq.f32.pop %v904
    %vm908 = vweird.f32 %v190
    %v909 = vadd.s32 %v905, 3
    %v910 = vand.u32 %v909, 3
    %vm911 = vcmp.lt.s32.totalorder %v910, 2
    %vm912 = vcmp.eq.s32.totalorder %v910, 0
    %v913 = vxor.u32 %v907, 2147483648
    %v914 = vsel %vm912, %v906, %v913
    %vm915 = vcmp.eq.s32.totalorder %v910, 2
    %v916 = vxor.u32 %v906, 2147483648
    %v917 = vsel %vm915, %v916, %v907
    %v918 = vsel %vm911, %v914, %v917
    %v919 = vsel %vm908, nan, %v918
    %v920 = vand.u32 2147483647, %v191
    %vm921 = vcmp.le.f32.partialorder %v920, 0.7853982
    %vm922 = vcmp.lt.s32.totalorder %v191, 0
    %v923 = vand.u32 %v191, 2139095040
    %v924 = vshrl.u32 %v923, 23
    %v925 = vsub.s32 %v924, 127
    %v926 = vand.u32 2147483647, %v191
    %v927 = vand.u32 %v926, 8388607
    %v928 = vor.u32 %v927, 8388608
    %v929 = vsub.s32 0, %v928
    %v930 = vadd.s32 %v925, 1
    %vm931 = vcmp.gt.s32.totalorder %v930, 0
    %v932 = vsel %vm931, %v930, 0
    %v933 = vshrl.u32 %v932, 5
    %v934 = vand.u32 %v932, 31
    %v935 = vsub.s32 32, %v934
    %v936 = vshrl.u32 683565275, %v935
    %v937 = vshll.u32 683565275, %v934
    %v938 = vshrl.u32 2475754826, %v935
    %v939 = vor.u32 %v937, %v938
    %v940 = vshll.u32 2475754826, %v934
    %v941 = vshrl.u32 2131351028, %v935
    %v942 = vor.u32 %v940, %v941
    %v943 = vshll.u32 2131351028, %v934
    %v944 = vshrl.u32 2102212464, %v935
    %v945 = vor.u32 %v943, %v944
    %v946 = vshll.u32 2102212464, %v934
    %v947 = vshrl.u32 920167782, %v935
    %v948 = vor.u32 %v946, %v947
    %v949 = vshll.u32 920167782, %v934
    %v950 = vshrl.u32 1326507024, %v935
    %v951 = vor.u32 %v949, %v950
    %vm952 = vcmp.lt.s32.totalorder %v933, 1
    %vm953 = vcmp.lt.s32.totalorder %v933, 2
    %vm954 = vcmp.lt.s32.totalorder %v933, 3
    %vm955 = vcmp.lt.s32.totalorder %v933, 4
    %v956 = vsel %vm952, %v936, %v939
    %v957 = vsel %vm955, %v945, 2102212464
    %v958 = vsel %vm954, %v942, %v957
    %v959 = vsel %vm953, %v956, %v958
    %v960 = vsel %vm952, %v939, %v942
    %v961 = vsel %vm955, %v948, 920167782
    %v962 = vsel %vm954, %v945, %v961
    %v963 = vsel %vm953, %v960, %v962
    %v964 = vsel %vm952, %v942, %v945
    %v965 = vsel %vm955, %v951, 1326507024
    %v966 = vsel %vm954, %v948, %v965
    %v967 = vsel %vm953, %v964, %v966
    %v968 = vshll.u32 %v928, 8
    %v969 = vmul.u32.u64.compose %v968, %v967
    %v970 = vextract.low.u32 %v969
    %v971 = vextract.high.u32 %v969
    %v972 = vmul.u32.u64.compose %v968, %v963
    %v973 = vextract.low.u32 %v972
    %v974 = vextract.high.u32 %v972
    %v975 = vmul.u32 %v968, %v959
    %v976 = vadd.s32 %v971, %v973
    %vm977 = vc.u32 %v971, %v973
    %v978 = vadd.s32 %v974, 1
    %v979 = vsel %vm977, %v978, %v974
    %v980 = vadd.s32 %v975, %v979
    %v981 = vadd.s32 %v980, 536870912
    %v982 = vshrl.u32 %v981, 30
    %v983 = vshll.u32 %v982, 30
    %v984 = vsub.s32 %v980, %v983
    %vm985 = vcmp.lt.s32.totalorder %v984, 0
    %v986 = vsub.s32 0, %v984
    %v987 = vsel %vm985, %v986, %v984
    %v988 = vclz %v987
    %v989 = vsub.s32 %v988, 2
    %vm990 = vcmp.gt.s32.totalorder 0, %v989
    %v991 = vsel %vm990, 0, %v989
    %v992 = vsub.s32 32, %v991
    %v993 = vshll.u32 %v984, %v991
    %v994 = vshrl.u32 %v976, %v992
    %v995 = vor.u32 %v993, %v994
    %v996 = vsub.s32 4294967266, %v991
    %v997 = vadd.s32 %v996, 127
    %v998 = vshll.u32 %v997, 23
    %v999 = vor.u32 4788187, %v998
    %v1000 = vand.u32 2147483647, %v999
    %v1002 = vcvt.s32.f32 %v995
    %v1003 = vmul.f32 %v1002, %v1000
    %v1004 = vxor.u32 %v1003, 2147483648
    %v1005 = vsel %vm922, %v1004, %v1003
    %v1006 = vsub.s32 4, %v982
    %v1007 = vsel %vm922, %v1006, %v982
    %v1008 = vsel %vm921, %v191, %v1005
    %v1009 = vsel %vm921, 0, %v1007
    %v1010 = vcosq.f32.pop %v1008
    %v1011 = vsinq.f32.pop %v1008
    %vm1012 = vweird.f32 %v191
    %v1013 = vadd.s32 %v1009, 3
    %v1014 = vand.u32 %v1013, 3
    %vm1015 = vcmp.lt.s32.totalorder %v1014, 2
    %vm1016 = vcmp.eq.s32.totalorder %v1014, 0
    %v1017 = vxor.u32 %v1011, 2147483648
    %v1018 = vsel %vm1016, %v1010, %v1017
    %vm1019 = vcmp.eq.s32.totalorder %v1014, 2
    %v1020 = vxor.u32 %v1010, 2147483648
    %v1021 = vsel %vm1019, %v1020, %v1011
    %v1022 = vsel %vm1015, %v1018, %v1021
    %v1023 = vsel %vm1012, nan, %v1022
    %v1024 = vmul.f32 %v166, %v711
    %v1025 = vmul.f32 %v173, %v815
    %v1026 = vmul.f32 %v180, %v919
    %v1027 = vmul.f32 %v187, %v1023
    %v1028 = vld [vmem:[#allocation3] sm:$0xff]
    %v1029 = vld [vmem:[#allocation3 + $0x8] sm:$0xff]
    %v1030 = vld [vmem:[#allocation3 + $0x10] sm:$0xff]
    %v1031 = vld [vmem:[#allocation3 + $0x18] sm:$0xff]
    %v1032 = vmul.f32 %v604, 0.1
    %v1033 = vmul.f32 %v605, 0.1
    %v1034 = vmul.f32 %v606, 0.1
    %v1035 = vmul.f32 %v607, 0.1
    %v1036 = vadd.f32 %v1028, %v1032
    %v1037 = vadd.f32 %v1029, %v1033
    %v1038 = vadd.f32 %v1030, %v1034
    %v1039 = vadd.f32 %v1031, %v1035
    %1040 = vst [vmem:[#allocation6] sm:$0xff] %v1036
    %1041 = vst [vmem:[#allocation6 + $0x8] sm:$0xff] %v1037
    %1042 = vst [vmem:[#allocation6 + $0x10] sm:$0xff] %v1038
    %1043 = vst [vmem:[#allocation6 + $0x18] sm:$0xff] %v1039
    %v1044 = vld [vmem:[#allocation3 + $0x20] sm:$0xff]
    %v1045 = vld [vmem:[#allocation3 + $0x28] sm:$0xff]
    %v1046 = vld [vmem:[#allocation3 + $0x30] sm:$0xff]
    %v1047 = vld [vmem:[#allocation3 + $0x38] sm:$0xff]
    %v1048 = vmul.f32 %v1024, 0.1
    %v1049 = vmul.f32 %v1025, 0.1
    %v1050 = vmul.f32 %v1026, 0.1
    %v1051 = vmul.f32 %v1027, 0.1
    %v1052 = vadd.f32 %v1044, %v1048
    %v1053 = vadd.f32 %v1045, %v1049
    %v1054 = vadd.f32 %v1046, %v1050
    %v1055 = vadd.f32 %v1047, %v1051
    %1056 = vst [vmem:[#allocation6 + $0x20] sm:$0xff] %v1052
    %1057 = vst [vmem:[#allocation6 + $0x28] sm:$0xff] %v1053
    %1058 = vst [vmem:[#allocation6 + $0x30] sm:$0xff] %v1054
    %1059 = vst [vmem:[#allocation6 + $0x38] sm:$0xff] %v1055
    // Predicated region
    $region14: #{tpu_custom_call.1} parent=1 // pred_check
      _
    $region15: #{tpu_custom_call.1} parent=1 // pred_check_branch
      %1061 = sbr.rel (0) target = $region17
    $region16: #{tpu_custom_call.1} parent=1 // pred_region
      %s1063 = ssub.s32 1024, 1024
      %1064 = vsyncadd [#allocation5], %s1063
      %s1065 = sshll.u32 [#allocation6], 4
      %s1066 = int_to_ptr.vmem [resolvable:$true] %s1065
      %1071 = dma.vmem_to_hbm [thread:$0]  %s1066, 1024, %s2, [#allocation5], 512, 512, 32
    $region17: #{tpu_custom_call.1} parent=1 // pred_fallthru
      _
    // Predicated region
    $region18: #{tpu_custom_call.1} parent=1 // pred_check
      _
    $region19: #{tpu_custom_call.1} parent=1 // pred_check_branch
      %1073 = sbr.rel (0) target = $region21
    $region20: #{tpu_custom_call.1} parent=1 // pred_region
      %1074 = dma.done [#allocation5], 1024
    $region21: #{tpu_custom_call.1} parent=1 // pred_fallthru
      _
    %1075 = vsyncpa [#allocation4], 1
    %1076 = vsyncpa [#allocation5], 1

</llo_original>
